<compile_context>
chip_gen: v5e
topology: v5e:2x2
jax: 0.10.0
libtpu: 0.0.40
codegen_flags: <defaults>
</compile_context>

<pallas_src>
import functools

import jax
import jax.numpy as jnp
from jax.experimental import pallas as pl
from jax.experimental.pallas import tpu as pltpu

LANES = 128
TILE_ROWS = 1024  # 1024x128 f32 = 512 KiB/block; 2 inputs x 2 bufs + acc ~= 2.5 MiB VMEM


def _single_block_kernel(yhat_ref, y_ref, out_ref, *, inv_n):
    """Whole (rows, 128) slab in one block: no accumulator, no grid carry."""
    d = yhat_ref[...].astype(jnp.float32) - y_ref[...].astype(jnp.float32)
    out_ref[0, 0] = jnp.sum(d * d) * jnp.float32(inv_n)


def _tiled_kernel(yhat_ref, y_ref, out_ref, acc_ref, *, inv_n, valid_rows, needs_mask):
    """Grid over row tiles; VMEM elementwise accumulator; one final reduce."""
    i = pl.program_id(0)

    @pl.when(i == 0)
    def _():
        acc_ref[...] = jnp.zeros_like(acc_ref)

    d = yhat_ref[...].astype(jnp.float32) - y_ref[...].astype(jnp.float32)
    dd = d * d
    if needs_mask:
        # Only emitted when the last row tile is ragged: zero out rows past the
        # true extent (OOB block contents are unspecified).
        row = i * TILE_ROWS + jax.lax.broadcasted_iota(
            jnp.int32, (TILE_ROWS, LANES), 0
        )
        dd = jnp.where(row < valid_rows, dd, 0.0)
    acc_ref[...] += dd

    @pl.when(i == pl.num_programs(0) - 1)
    def _():
        out_ref[0, 0] = jnp.sum(acc_ref[...]) * jnp.float32(inv_n)


def ordinal_mse_loss(yhat: jax.Array, y: jax.Array) -> jax.Array:
    """Pallas TPU implementation of OrdinalMSELoss.forward (scalar MSE)."""
    assert yhat.shape == y.shape, "yhat and y must have the same shape"
    n = yhat.size
    if n == 0:
        # Matches torch mean of an empty tensor (NaN).
        return jnp.float32(float("nan"))
    inv_n = 1.0 / float(n)

    # Flatten in native dtype; pad only the final partial lane row (< 128 elems).
    flat_yhat = yhat.reshape(-1)
    flat_y = y.reshape(-1)
    rem = n % LANES
    if rem:
        pad = LANES - rem
        flat_yhat = jnp.pad(flat_yhat, (0, pad))
        flat_y = jnp.pad(flat_y, (0, pad))

    rows = flat_yhat.size // LANES
    yhat2d = flat_yhat.reshape(rows, LANES)
    y2d = flat_y.reshape(rows, LANES)

    if rows <= TILE_ROWS:
        # Fast path: one block covering the whole array (block == full dims).
        kernel = functools.partial(_single_block_kernel, inv_n=inv_n)
        out = pl.pallas_call(
            kernel,
            out_shape=jax.ShapeDtypeStruct((1, 1), jnp.float32),
            grid_spec=pltpu.PrefetchScalarGridSpec(
                num_scalar_prefetch=0,
                grid=(1,),
                in_specs=[
                    pl.BlockSpec((rows, LANES), lambda i: (0, 0)),
                    pl.BlockSpec((rows, LANES), lambda i: (0, 0)),
                ],
                out_specs=pl.BlockSpec(memory_space=pltpu.SMEM),
            ),
        )(yhat2d, y2d)
        return out[0, 0]

    num_tiles = (rows + TILE_ROWS - 1) // TILE_ROWS
    needs_mask = (num_tiles * TILE_ROWS) != rows
    kernel = functools.partial(
        _tiled_kernel, inv_n=inv_n, valid_rows=rows, needs_mask=needs_mask
    )
    out = pl.pallas_call(
        kernel,
        out_shape=jax.ShapeDtypeStruct((1, 1), jnp.float32),
        grid_spec=pltpu.PrefetchScalarGridSpec(
            num_scalar_prefetch=0,
            grid=(num_tiles,),
            in_specs=[
                pl.BlockSpec((TILE_ROWS, LANES), lambda i: (i, 0)),
                pl.BlockSpec((TILE_ROWS, LANES), lambda i: (i, 0)),
            ],
            out_specs=pl.BlockSpec(memory_space=pltpu.SMEM),
            scratch_shapes=[pltpu.VMEM((TILE_ROWS, LANES), jnp.float32)],
        ),
        compiler_params=pltpu.CompilerParams(
            dimension_semantics=("arbitrary",),  # reduction (output carried) axis
        ),
    )(yhat2d, y2d)
    return out[0, 0]


if __name__ == "__main__":
    key = jax.random.PRNGKey(0)
    k1, k2, k3, k4 = jax.random.split(key, 4)

    # Primary check: small shape consistent with a generic prediction/target pair.
    shape = (2, 4, 16, 16)
    yhat = jax.random.normal(k1, shape, dtype=jnp.float32)
    y = jax.random.normal(k2, shape, dtype=jnp.float32)
    loss = jax.block_until_ready(ordinal_mse_loss(yhat, y))
    ref = jnp.mean(jnp.abs(yhat - y) ** 2)
    assert jnp.allclose(loss, ref, rtol=1e-5, atol=1e-6), (loss, ref)

    # Secondary check: exercises the tiled path + ragged-row masking + bf16 inputs
    # (133,120 elements -> 1040 lane rows -> 2 grid steps with a partial last tile).
    shape2 = (2, 4, 128, 130)
    yhat2 = jax.random.normal(k3, shape2, dtype=jnp.bfloat16)
    y2 = jax.random.normal(k4, shape2, dtype=jnp.bfloat16)
    loss2 = jax.block_until_ready(ordinal_mse_loss(yhat2, y2))
    d2 = yhat2.astype(jnp.float32) - y2.astype(jnp.float32)
    ref2 = jnp.mean(jnp.abs(d2) ** 2)
    assert jnp.allclose(loss2, ref2, rtol=1e-4, atol=1e-6), (loss2, ref2)

    print("KERNEL_OK")
</pallas_src>

<mosaic_0001>
module attributes {stable_mosaic.version = 11 : i64} {
  func.func @_single_block_kernel(%arg0: i32, %arg1: memref<16x128xf32, #tpu.memory_space<vmem>>, %arg2: memref<16x128xf32, #tpu.memory_space<vmem>>, %arg3: memref<1x1xf32, #tpu.memory_space<smem>>) attributes {dimension_semantics = [#tpu.dimension_semantics<arbitrary>], iteration_bounds = array<i64: 1>, scalar_prefetch = 0 : i64, scratch_operands = 0 : i64, tpu.core_type = #tpu.core_type<tc>, window_params = [{pipeline_mode = #tpu.pipeline_mode<synchronous>, transform_indices = @transform_0, window_bounds = array<i64: 16, 128>}, {pipeline_mode = #tpu.pipeline_mode<synchronous>, transform_indices = @transform_1, window_bounds = array<i64: 16, 128>}, {transform_indices = @transform_2, window_bounds = array<i64: 1, 1>}]} {
    %c0 = arith.constant 0 : index
    %c0_0 = arith.constant 0 : index
    %0 = vector.load %arg1[%c0, %c0_0] : memref<16x128xf32, #tpu.memory_space<vmem>>, vector<16x128xf32>
    %c0_1 = arith.constant 0 : index
    %c0_2 = arith.constant 0 : index
    %1 = vector.load %arg2[%c0_1, %c0_2] : memref<16x128xf32, #tpu.memory_space<vmem>>, vector<16x128xf32>
    %2 = arith.subf %0, %1 : vector<16x128xf32>
    %3 = arith.mulf %2, %2 : vector<16x128xf32>
    %4 = vector.shape_cast %3 : vector<16x128xf32> to vector<1x16x128xf32>
    %cst = arith.constant dense<0.000000e+00> : vector<1xf32>
    %5 = vector.multi_reduction <add>, %4, %cst [1, 2] : vector<1x16x128xf32> to vector<1xf32>
    %6 = vector.shape_cast %5 : vector<1xf32> to vector<1x1x1xf32>
    %7 = vector.extract %6[0, 0, 0] : f32 from vector<1x1x1xf32>
    %cst_3 = arith.constant 4.8828125E-4 : f32
    %8 = arith.mulf %7, %cst_3 : f32
    %c0_4 = arith.constant 0 : index
    %c0_5 = arith.constant 0 : index
    %9 = memref.load %arg3[%c0_4, %c0_5] : memref<1x1xf32, #tpu.memory_space<smem>>
    memref.store %8, %arg3[%c0_4, %c0_5] : memref<1x1xf32, #tpu.memory_space<smem>>
    return
  }
  func.func @transform_0(%arg0: i32) -> (i32, i32) {
    %c0_i32 = arith.constant 0 : i32
    %c0_i32_0 = arith.constant 0 : i32
    %c0_i32_1 = arith.constant 0 : i32
    return %c0_i32, %c0_i32_0 : i32, i32
  }
  func.func @transform_1(%arg0: i32) -> (i32, i32) {
    %c0_i32 = arith.constant 0 : i32
    %c0_i32_0 = arith.constant 0 : i32
    %c0_i32_1 = arith.constant 0 : i32
    return %c0_i32, %c0_i32_0 : i32, i32
  }
  func.func @transform_2(%arg0: i32) -> (i32, i32) {
    %c0_i32 = arith.constant 0 : i32
    %c0_i32_0 = arith.constant 0 : i32
    %c0_i32_1 = arith.constant 0 : i32
    return %c0_i32, %c0_i32_0 : i32, i32
  }
}

</mosaic_0001>

<llo_original>
// kernel: tpu_custom_call.1
$region0: #{tpu_custom_call.1}
  #allocation0 [shape = 'u32[]', space=smem, size = 0x4, offset = 0x4, fixed_abs, tag = 'smem constant byte address 0x4 - core index']
  #allocation1 [shape = 'u32[72,128]{1,0:T(1,128)}', space=vmem, size = 0x9000, scoped, tag = 'internal scratch']
  %s0 = inlined_call_operand.hbm [shape: f32[16,128], index: 0, kind: input, shape index: {}]
  %s1 = inlined_call_operand.hbm [shape: f32[16,128], index: 1, kind: input, shape index: {}]
  %s2 = inlined_call_operand.hbm [shape: f32[1,1], index: 2, kind: output, shape index: {}]
  %s3 = sld [smem:[#allocation0]]
  $region26: #{tpu_custom_call.1} parent=0
    _
  %s5 = ssub.s32 1, %s3
  %s6 = scalar_select 0, %s5, %s3
  $region1: #{tpu_custom_call.1} parent=0
    #allocation2 [shape = 'u8[8192]{0}', space=vmem, size = 0x2000, scoped, tag = 'input window, operand 0, single buffered']
    #allocation3 [shape = 's32[1]{0}', space=sflag, size = 0x4, scoped, tag = 'scoped memory for tpu_custom_call.1']
    #allocation4 [shape = 's32[1]{0}', space=sflag, size = 0x4, scoped, tag = 'scoped memory for tpu_custom_call.1']
    #allocation5 [shape = 'u8[8192]{0}', space=vmem, size = 0x2000, scoped, tag = 'input window, operand 1, single buffered']
    #allocation6 [shape = 's32[1]{0}', space=sflag, size = 0x4, scoped, tag = 'scoped memory for tpu_custom_call.1']
    #allocation7 [shape = 'u8[512]{0}', space=smem, size = 0x200, scoped, tag = 'output window, operand 0, single buffered']
    %7 = vsyncpa [#allocation3], 0
    %8 = vsyncpa [#allocation6], 0
    %9 = vsyncpa [#allocation4], 0
    // Predicated region
    $region2: #{tpu_custom_call.1} parent=1 // pred_check
      _
    $region3: #{tpu_custom_call.1} parent=1 // pred_check_branch
      %11 = sbr.rel (0) target = $region5
    $region4: #{tpu_custom_call.1} parent=1 // pred_region
      %13 = vsyncadd [#allocation3], 0
      %s14 = sshll.u32 %s0, 4
      %s15 = int_to_ptr.hbm [resolvable:$true] %s14
      %s16 = sshll.u32 [#allocation2], 4
      %s17 = int_to_ptr.vmem [resolvable:$true] %s16
      %22 = dma.hbm_to_vmem [thread:$0]  %s15, 256, %s17, [#allocation3], 128, 128, 8
    $region5: #{tpu_custom_call.1} parent=1 // pred_fallthru
      _
    // Predicated region
    $region6: #{tpu_custom_call.1} parent=1 // pred_check
      _
    $region7: #{tpu_custom_call.1} parent=1 // pred_check_branch
      %24 = sbr.rel (0) target = $region9
    $region8: #{tpu_custom_call.1} parent=1 // pred_region
      %26 = vsyncadd [#allocation6], 0
      %s27 = sshll.u32 %s1, 4
      %s28 = int_to_ptr.hbm [resolvable:$true] %s27
      %s29 = sshll.u32 [#allocation5], 4
      %s30 = int_to_ptr.vmem [resolvable:$true] %s29
      %35 = dma.hbm_to_vmem [thread:$0]  %s28, 256, %s30, [#allocation6], 128, 128, 8
    $region9: #{tpu_custom_call.1} parent=1 // pred_fallthru
      _
    // Predicated region
    $region10: #{tpu_custom_call.1} parent=1 // pred_check
      _
    $region11: #{tpu_custom_call.1} parent=1 // pred_check_branch
      %37 = sbr.rel (0) target = $region13
    $region12: #{tpu_custom_call.1} parent=1 // pred_region
      %39 = dma.done [#allocation3], 256
    $region13: #{tpu_custom_call.1} parent=1 // pred_fallthru
      _
    // Predicated region
    $region14: #{tpu_custom_call.1} parent=1 // pred_check
      _
    $region15: #{tpu_custom_call.1} parent=1 // pred_check_branch
      %41 = sbr.rel (0) target = $region17
    $region16: #{tpu_custom_call.1} parent=1 // pred_region
      %43 = dma.done [#allocation6], 256
    $region17: #{tpu_custom_call.1} parent=1 // pred_fallthru
      _
    %v44 = vld [vmem:[#allocation2] sm:$0xff]
    %v45 = vld [vmem:[#allocation2 + $0x8] sm:$0xff]
    %v46 = vld [vmem:[#allocation5] sm:$0xff]
    %v47 = vld [vmem:[#allocation5 + $0x8] sm:$0xff]
    %v48 = vsub.f32 %v44, %v46
    %v49 = vsub.f32 %v45, %v47
    %v50 = vmul.f32 %v48, %v48
    %v51 = vmul.f32 %v49, %v49
    %v52 = vadd.f32 %v50, %v51
    %53 = vadd.xlane.f32.xlu0 %v52
    %v54 = vpop.xlane.xlu0 %53
    %v55 = vrot.slane %v54, 4
    %v56 = vadd.f32 %v54, %v55
    %v57 = vrot.slane %v56, 2
    %v58 = vadd.f32 %v56, %v57
    %v59 = vrot.slane %v58, 1
    %v60 = vadd.f32 %v58, %v59
    %s61 = vtos %v60
    %s62 = smul.f32 %s61, 0.00048828125
    %s63 = scalar_lea.smem [#allocation7], 0
    %64 = sst [smem:[%s63]] %s62
    // Predicated region
    $region18: #{tpu_custom_call.1} parent=1 // pred_check
      _
    $region19: #{tpu_custom_call.1} parent=1 // pred_check_branch
      %66 = sbr.rel (0) target = $region21
    $region20: #{tpu_custom_call.1} parent=1 // pred_region
      %68 = vsyncadd [#allocation4], 0
      %s70 = sshll.u32 %s2, 4
      %s71 = int_to_ptr.hbm [resolvable:$true] %s70
      %73 = dma.smem_to_hbm [#allocation7], 16, %s71, [#allocation4]
    $region21: #{tpu_custom_call.1} parent=1 // pred_fallthru
      _
    // Predicated region
    $region22: #{tpu_custom_call.1} parent=1 // pred_check
      _
    $region23: #{tpu_custom_call.1} parent=1 // pred_check_branch
      %75 = sbr.rel (0) target = $region25
    $region24: #{tpu_custom_call.1} parent=1 // pred_region
      %77 = dma.done [#allocation4], 16
    $region25: #{tpu_custom_call.1} parent=1 // pred_fallthru
      _
    %78 = sfence
    %79 = vsyncpa [#allocation3], 1
    %80 = vsyncpa [#allocation6], 1
    %81 = vsyncpa [#allocation4], 1

</llo_original>
